<compile_context>
chip_gen: v7x
topology: tpu7x:2x2x1
jax: 0.10.0
libtpu: 0.0.40
codegen_flags: <defaults>
</compile_context>

<pallas_src>
import functools

import jax
import jax.numpy as jnp
from jax.experimental import pallas as pl
from jax.experimental.pallas import tpu as pltpu


def _leaky(x, slope=0.2):
    return jnp.where(x >= 0, x, slope * x)


def _round_up(x, m):
    return (x + m - 1) // m * m


def bottleneck_kernel(x_ref, halo_ref, w1_ref, w2_ref, w3_ref,
                      scale_ref, shift_ref, o_ref, *, matmul_dtype):
    """One (batch, L-tile) grid step, channel-first.

    x_ref    : (1, Cp, TL)    activation tile (act_dtype)
    halo_ref : (1, 1, Cp, 2)  columns just left / right of this tile
    w1_ref   : (Pp, Cp)       conv1 (1x1) weight
    w2_ref   : (3, Pp, Pp)    conv2 (k=3) taps for offsets -1, 0, +1
    w3_ref   : (Cp, Pp)       conv3 (1x1) weight
    scale/shift : (Cp, 1)     folded eval-mode BatchNorm1d
    o_ref    : (1, Cp, TL)
    """
    f32 = jnp.float32
    md = matmul_dtype
    tl = x_ref.shape[-1]

    x = x_ref[0]                                       # (Cp, TL)
    xm = x.astype(md)
    xh = halo_ref[0, 0].astype(md)                     # (Cp, 2)

    # conv1 (kernel_size=1) on the tile and on the two halo columns.
    h1 = _leaky(jnp.dot(w1_ref[...], xm, preferred_element_type=f32))    # (Pp, TL)
    h1h = _leaky(jnp.dot(w1_ref[...], xh, preferred_element_type=f32))   # (Pp, 2)
    h1m = h1.astype(md)
    h1hm = h1h.astype(md)

    # conv2 (kernel_size=3, padding=1):
    #   h2[:, l] = W0 @ h1[:, l-1] + W1 @ h1[:, l] + W2 @ h1[:, l+1]
    # Shifted operands come from the in-tile h1; the out-of-tile columns come
    # from the halo h1 (zero at the true sequence edges).
    h1_left = jnp.concatenate([h1hm[:, 0:1], h1m[:, :tl - 1]], axis=1)    # h1[:, l-1]
    h1_right = jnp.concatenate([h1m[:, 1:], h1hm[:, 1:2]], axis=1)        # h1[:, l+1]
    h2 = _leaky(jnp.dot(w2_ref[0], h1_left, preferred_element_type=f32)
                + jnp.dot(w2_ref[1], h1m, preferred_element_type=f32)
                + jnp.dot(w2_ref[2], h1_right, preferred_element_type=f32))  # (Pp, TL)

    # conv3 (kernel_size=1) + folded BN + residual + LeakyReLU, all in f32.
    h3 = jnp.dot(w3_ref[...], h2.astype(md), preferred_element_type=f32)  # (Cp, TL)
    h3 = h3 * scale_ref[...] + shift_ref[...]
    o_ref[0] = _leaky(h3 + x.astype(f32)).astype(o_ref.dtype)


def bottleneck_forward(x_ncl, w1, w2, w3, bn_gamma, bn_beta, bn_mean, bn_var,
                       *, eps=1e-5, tile_l=1024,
                       matmul_dtype=jnp.float32, act_dtype=jnp.float32):
    """x_ncl: (N, Cin, L) (PyTorch layout). Returns (N, Cin, L) in x's dtype."""
    N, Cin, L = x_ncl.shape
    P = w1.shape[0]                       # planes
    C4 = w3.shape[0]                      # planes * expansion
    assert C4 == Cin, "no downsample: residual requires inplanes == planes * 4"

    f32 = jnp.float32
    io_b = jnp.dtype(act_dtype).itemsize
    md_b = jnp.dtype(matmul_dtype).itemsize
    Cp = _round_up(Cin, 8)                # sublane-aligned channels
    Pp = _round_up(P, 8)                  # sublane-aligned planes

    # ---- L tiling: large lane-dense tiles, auto-shrunk for a v7x-safe budget
    def vmem_est(tl):
        tiles = 2 * 2 * Cp * tl * io_b                 # in + out, double-buffered
        interm = (2 * Cp + 4 * Pp) * tl * 4            # f32 temporaries
        wbytes = (Pp * Cp + 3 * Pp * Pp + Cp * Pp) * md_b + 2 * Cp * 4
        return tiles + interm + 2 * wbytes + 4 * Cp * io_b

    VMEM_CAP = 40 * 1024 * 1024           # working-set headroom under v7x 64 MiB/TC
    tile = max(8, min(int(tile_l), L))
    tile = _round_up(tile, 8)
    while vmem_est(tile) > VMEM_CAP and tile > 128:
        tile = max(128, tile // 2)
    if tile < L:                          # tiled along L -> keep tiles lane-dense
        tile = max(128, (tile // 128) * 128)
    L_pad = _round_up(L, tile)
    T = L_pad // tile
    vmem_limit = int(min(48 * 1024 * 1024, max(8 * 1024 * 1024, 2 * vmem_est(tile))))

    # ---- weights: channel-first matmul form, 8-aligned, fused BN -----------
    w1_m = jnp.zeros((Pp, Cp), f32).at[:P, :Cin].set(w1[:, :, 0].astype(f32))
    w2_m = jnp.zeros((3, Pp, Pp), f32).at[:, :P, :P].set(
        jnp.transpose(w2, (2, 0, 1)).astype(f32))
    w3_m = jnp.zeros((Cp, Pp), f32).at[:C4, :P].set(w3[:, :, 0].astype(f32))
    scale = (bn_gamma.astype(f32) / jnp.sqrt(bn_var.astype(f32) + eps))
    shift = bn_beta.astype(f32) - bn_mean.astype(f32) * scale
    scale_p = jnp.zeros((Cp, 1), f32).at[:C4, 0].set(scale)
    shift_p = jnp.zeros((Cp, 1), f32).at[:C4, 0].set(shift)
    w1_m = w1_m.astype(matmul_dtype)
    w2_m = w2_m.astype(matmul_dtype)
    w3_m = w3_m.astype(matmul_dtype)

    # ---- activations: NCL consumed directly; pad only when misaligned ------
    # TODO(synk): in a full bf16 pipeline the input would already arrive as
    # act_dtype; the cast below is only needed for this standalone f32 module.
    x = x_ncl.astype(act_dtype)
    if Cp != Cin or L_pad != L:
        x = jnp.pad(x, ((0, 0), (0, Cp - Cin), (0, L_pad - L)))

    # Tiny halo side-array: columns just left/right of every tile (zero at the
    # sequence edges).  ~2/tile_l of the activation bytes - no full HBM pass.
    if T > 1:
        lasts = x[:, :, tile - 1::tile]                         # (N, Cp, T)
        firsts = x[:, :, 0::tile]                               # (N, Cp, T)
        zcol = jnp.zeros((N, Cp, 1), x.dtype)
        h_left = jnp.concatenate([zcol, lasts[:, :, :T - 1]], axis=2)
        h_right = jnp.concatenate([firsts[:, :, 1:], zcol], axis=2)
        halo = jnp.stack([h_left, h_right], axis=3)             # (N, Cp, T, 2)
        halo = jnp.transpose(halo, (0, 2, 1, 3))                # (N, T, Cp, 2)
    else:
        halo = jnp.zeros((N, 1, Cp, 2), x.dtype)

    # ---- grid: larger axis first so v7x's 2 TensorCores stay balanced ------
    if N >= T:
        grid = (N, T)
        def nt(a, b):
            return a, b
    else:
        grid = (T, N)
        def nt(a, b):
            return b, a

    def x_map(a, b):
        n, t = nt(a, b)
        return (n, 0, t)

    def halo_map(a, b):
        n, t = nt(a, b)
        return (n, t, 0, 0)

    const = lambda shape: pl.BlockSpec(shape, lambda a, b: (0,) * len(shape))
    kernel = functools.partial(bottleneck_kernel, matmul_dtype=matmul_dtype)

    out = pl.pallas_call(
        kernel,
        out_shape=jax.ShapeDtypeStruct((N, Cp, L_pad), act_dtype),
        grid_spec=pltpu.PrefetchScalarGridSpec(
            num_scalar_prefetch=0,
            grid=grid,
            in_specs=[
                pl.BlockSpec((1, Cp, tile), x_map),
                pl.BlockSpec((1, 1, Cp, 2), halo_map),
                const((Pp, Cp)),
                const((3, Pp, Pp)),
                const((Cp, Pp)),
                const((Cp, 1)),
                const((Cp, 1)),
            ],
            out_specs=pl.BlockSpec((1, Cp, tile), x_map),
        ),
        compiler_params=pltpu.CompilerParams(
            dimension_semantics=("parallel", "parallel"),
            vmem_limit_bytes=vmem_limit),
    )(x, halo, w1_m, w2_m, w3_m, scale_p, shift_p)

    out = out[:, :Cin, :L]
    return out.astype(x_ncl.dtype)


def _reference(x_ncl, w1, w2, w3, bn_gamma, bn_beta, bn_mean, bn_var,
               eps=1e-5, compute_dtype=jnp.float32):
    """Plain-JAX reference matching PyTorch semantics (optionally bf16 matmuls)."""
    leaky = lambda v: jnp.where(v >= 0, v, 0.2 * v)
    cd = compute_dtype
    mm = lambda a, w: jnp.einsum('ncl,pc->npl', a.astype(cd), w.astype(cd),
                                 preferred_element_type=jnp.float32)
    x = x_ncl                                                # (N, C, L)
    h1 = leaky(mm(x, w1[:, :, 0]))
    h1p = jnp.pad(h1, ((0, 0), (0, 0), (1, 1)))
    h2 = leaky(mm(h1p[:, :, 0:-2], w2[:, :, 0])
               + mm(h1p[:, :, 1:-1], w2[:, :, 1])
               + mm(h1p[:, :, 2:], w2[:, :, 2]))
    h3 = mm(h2, w3[:, :, 0])
    scale = bn_gamma / jnp.sqrt(bn_var + eps)
    shift = bn_beta - bn_mean * scale
    h3 = h3 * scale[None, :, None] + shift[None, :, None]
    return leaky(h3 + x)


if __name__ == "__main__":
    key = jax.random.PRNGKey(0)

    def make_case(k, N, planes, L):
        inplanes = planes * 4   # expansion = 4; required for residual (no downsample)
        ks = jax.random.split(k, 8)
        x = jax.random.normal(ks[0], (N, inplanes, L), jnp.float32)
        w1 = jax.random.normal(ks[1], (planes, inplanes, 1), jnp.float32) * 0.1
        w2 = jax.random.normal(ks[2], (planes, planes, 3), jnp.float32) * 0.1
        w3 = jax.random.normal(ks[3], (inplanes, planes, 1), jnp.float32) * 0.1
        g = 1.0 + 0.1 * jax.random.normal(ks[4], (inplanes,), jnp.float32)
        b = 0.1 * jax.random.normal(ks[5], (inplanes,), jnp.float32)
        m = 0.1 * jax.random.normal(ks[6], (inplanes,), jnp.float32)
        v = jnp.abs(1.0 + 0.1 * jax.random.normal(ks[7], (inplanes,), jnp.float32))
        return (x, w1, w2, w3, g, b, m, v)

    k1, k2, k3 = jax.random.split(key, 3)

    # Case A: single L tile, f32 matmuls (tight tolerance).
    args = make_case(k1, N=2, planes=8, L=16)
    out = jax.block_until_ready(
        jax.jit(lambda *a: bottleneck_forward(*a, tile_l=1024))(*args))
    ref = _reference(*args)
    assert out.shape == args[0].shape
    assert jnp.allclose(out, ref, atol=1e-4, rtol=1e-4), "case A (f32) mismatch"

    # Case B: multiple L tiles (exercises the halo path + T-major grid) and
    # padded dims (planes=5 -> Pp=8, Cin=20 -> Cp=24), f32 (tight tolerance).
    args = make_case(k2, N=2, planes=5, L=384)
    out = jax.block_until_ready(
        jax.jit(lambda *a: bottleneck_forward(*a, tile_l=128))(*args))
    ref = _reference(*args)
    assert jnp.allclose(out, ref, atol=1e-4, rtol=1e-4), "case B (tiled f32) mismatch"

    # Case C: bf16 activation I/O + bf16 MXU operands (f32 accumulation) —
    # the HBM-bandwidth fast path on v6e / v7x.
    args = make_case(k3, N=2, planes=8, L=384)
    out = jax.block_until_ready(
        jax.jit(lambda *a: bottleneck_forward(
            *a, tile_l=128, matmul_dtype=jnp.bfloat16,
            act_dtype=jnp.bfloat16))(*args))
    xq = args[0].astype(jnp.bfloat16).astype(jnp.float32)
    ref = _reference(xq, *args[1:], compute_dtype=jnp.bfloat16)
    assert jnp.allclose(out, ref, atol=3e-2, rtol=3e-2), "case C (bf16) mismatch"

    print("KERNEL_OK")
</pallas_src>

<mosaic_0001>
module attributes {stable_mosaic.version = 11 : i64} {
  func.func @bottleneck_kernel(%arg0: i32, %arg1: i32, %arg2: memref<1x32x16xf32, #tpu.memory_space<vmem>>, %arg3: memref<1x1x32x2xf32, #tpu.memory_space<vmem>>, %arg4: memref<8x32xf32, #tpu.memory_space<vmem>>, %arg5: memref<3x8x8xf32, #tpu.memory_space<vmem>>, %arg6: memref<32x8xf32, #tpu.memory_space<vmem>>, %arg7: memref<32x1xf32, #tpu.memory_space<vmem>>, %arg8: memref<32x1xf32, #tpu.memory_space<vmem>>, %arg9: memref<1x32x16xf32, #tpu.memory_space<vmem>>) attributes {dimension_semantics = [#tpu.dimension_semantics<parallel>, #tpu.dimension_semantics<parallel>], iteration_bounds = array<i64: 2, 1>, scalar_prefetch = 0 : i64, scratch_operands = 0 : i64, tpu.core_type = #tpu.core_type<tc>, window_params = [{transform_indices = @transform_0, window_bounds = array<i64: 1, 32, 16>}, {transform_indices = @transform_1, window_bounds = array<i64: 1, 1, 32, 2>}, {pipeline_mode = #tpu.pipeline_mode<synchronous>, transform_indices = @transform_2, window_bounds = array<i64: 8, 32>}, {pipeline_mode = #tpu.pipeline_mode<synchronous>, transform_indices = @transform_3, window_bounds = array<i64: 3, 8, 8>}, {pipeline_mode = #tpu.pipeline_mode<synchronous>, transform_indices = @transform_4, window_bounds = array<i64: 32, 8>}, {pipeline_mode = #tpu.pipeline_mode<synchronous>, transform_indices = @transform_5, window_bounds = array<i64: 32, 1>}, {pipeline_mode = #tpu.pipeline_mode<synchronous>, transform_indices = @transform_6, window_bounds = array<i64: 32, 1>}, {transform_indices = @transform_7, window_bounds = array<i64: 1, 32, 16>}]} {
    %c0 = arith.constant 0 : index
    %c0_0 = arith.constant 0 : index
    %c0_1 = arith.constant 0 : index
    %0 = vector.load %arg2[%c0, %c0_0, %c0_1] : memref<1x32x16xf32, #tpu.memory_space<vmem>>, vector<1x32x16xf32>
    %1 = vector.shape_cast %0 : vector<1x32x16xf32> to vector<32x16xf32>
    %c0_2 = arith.constant 0 : index
    %c0_3 = arith.constant 0 : index
    %c0_4 = arith.constant 0 : index
    %c0_5 = arith.constant 0 : index
    %2 = vector.load %arg3[%c0_2, %c0_3, %c0_4, %c0_5] : memref<1x1x32x2xf32, #tpu.memory_space<vmem>>, vector<1x1x32x2xf32>
    %3 = vector.shape_cast %2 : vector<1x1x32x2xf32> to vector<32x2xf32>
    %c0_6 = arith.constant 0 : index
    %c0_7 = arith.constant 0 : index
    %4 = vector.load %arg4[%c0_6, %c0_7] : memref<8x32xf32, #tpu.memory_space<vmem>>, vector<8x32xf32>
    %cst = arith.constant dense<0.000000e+00> : vector<8x16xf32>
    %5 = tpu.matmul %4, %1, %cst {dimension_numbers = #tpu.dot_dimension_numbers<[1], [0], [0], [1], [0, 0, 1, 1], [], []>} : vector<8x32xf32>, vector<32x16xf32>, vector<8x16xf32> -> vector<8x16xf32>
    %cst_8 = arith.constant 0.000000e+00 : f32
    %6 = vector.broadcast %cst_8 : f32 to vector<8x16xf32>
    %7 = arith.cmpf oge, %5, %6 : vector<8x16xf32>
    %cst_9 = arith.constant 2.000000e-01 : f32
    %8 = vector.broadcast %cst_9 : f32 to vector<8x16xf32>
    %9 = arith.mulf %8, %5 : vector<8x16xf32>
    %10 = arith.select %7, %5, %9 : vector<8x16xi1>, vector<8x16xf32>
    %c0_10 = arith.constant 0 : index
    %c0_11 = arith.constant 0 : index
    %11 = vector.load %arg4[%c0_10, %c0_11] : memref<8x32xf32, #tpu.memory_space<vmem>>, vector<8x32xf32>
    %cst_12 = arith.constant dense<0.000000e+00> : vector<8x2xf32>
    %12 = tpu.matmul %11, %3, %cst_12 {dimension_numbers = #tpu.dot_dimension_numbers<[1], [0], [0], [1], [0, 0, 1, 1], [], []>} : vector<8x32xf32>, vector<32x2xf32>, vector<8x2xf32> -> vector<8x2xf32>
    %cst_13 = arith.constant 0.000000e+00 : f32
    %13 = vector.broadcast %cst_13 : f32 to vector<8x2xf32>
    %14 = arith.cmpf oge, %12, %13 : vector<8x2xf32>
    %cst_14 = arith.constant 2.000000e-01 : f32
    %15 = vector.broadcast %cst_14 : f32 to vector<8x2xf32>
    %16 = arith.mulf %15, %12 : vector<8x2xf32>
    %17 = arith.select %14, %12, %16 : vector<8x2xi1>, vector<8x2xf32>
    %18 = vector.extract_strided_slice %17 {offsets = [0, 0], sizes = [8, 1], strides = [1, 1]} : vector<8x2xf32> to vector<8x1xf32>
    %19 = vector.extract_strided_slice %10 {offsets = [0, 0], sizes = [8, 15], strides = [1, 1]} : vector<8x16xf32> to vector<8x15xf32>
    %20 = tpu.concatenate %18, %19 in 1 : vector<8x1xf32>, vector<8x15xf32> -> vector<8x16xf32>
    %21 = vector.extract_strided_slice %10 {offsets = [0, 1], sizes = [8, 15], strides = [1, 1]} : vector<8x16xf32> to vector<8x15xf32>
    %22 = vector.extract_strided_slice %17 {offsets = [0, 1], sizes = [8, 1], strides = [1, 1]} : vector<8x2xf32> to vector<8x1xf32>
    %23 = tpu.concatenate %21, %22 in 1 : vector<8x15xf32>, vector<8x1xf32> -> vector<8x16xf32>
    %c0_15 = arith.constant 0 : index
    %c0_16 = arith.constant 0 : index
    %c0_17 = arith.constant 0 : index
    %24 = vector.load %arg5[%c0_15, %c0_16, %c0_17] : memref<3x8x8xf32, #tpu.memory_space<vmem>>, vector<1x8x8xf32>
    %25 = vector.shape_cast %24 : vector<1x8x8xf32> to vector<8x8xf32>
    %cst_18 = arith.constant dense<0.000000e+00> : vector<8x16xf32>
    %26 = tpu.matmul %25, %20, %cst_18 {dimension_numbers = #tpu.dot_dimension_numbers<[1], [0], [0], [1], [0, 0, 1, 1], [], []>} : vector<8x8xf32>, vector<8x16xf32>, vector<8x16xf32> -> vector<8x16xf32>
    %c1 = arith.constant 1 : index
    %c0_19 = arith.constant 0 : index
    %c0_20 = arith.constant 0 : index
    %27 = vector.load %arg5[%c1, %c0_19, %c0_20] : memref<3x8x8xf32, #tpu.memory_space<vmem>>, vector<1x8x8xf32>
    %28 = vector.shape_cast %27 : vector<1x8x8xf32> to vector<8x8xf32>
    %cst_21 = arith.constant dense<0.000000e+00> : vector<8x16xf32>
    %29 = tpu.matmul %28, %10, %cst_21 {dimension_numbers = #tpu.dot_dimension_numbers<[1], [0], [0], [1], [0, 0, 1, 1], [], []>} : vector<8x8xf32>, vector<8x16xf32>, vector<8x16xf32> -> vector<8x16xf32>
    %30 = arith.addf %26, %29 : vector<8x16xf32>
    %c2 = arith.constant 2 : index
    %c0_22 = arith.constant 0 : index
    %c0_23 = arith.constant 0 : index
    %31 = vector.load %arg5[%c2, %c0_22, %c0_23] : memref<3x8x8xf32, #tpu.memory_space<vmem>>, vector<1x8x8xf32>
    %32 = vector.shape_cast %31 : vector<1x8x8xf32> to vector<8x8xf32>
    %cst_24 = arith.constant dense<0.000000e+00> : vector<8x16xf32>
    %33 = tpu.matmul %32, %23, %cst_24 {dimension_numbers = #tpu.dot_dimension_numbers<[1], [0], [0], [1], [0, 0, 1, 1], [], []>} : vector<8x8xf32>, vector<8x16xf32>, vector<8x16xf32> -> vector<8x16xf32>
    %34 = arith.addf %30, %33 : vector<8x16xf32>
    %cst_25 = arith.constant 0.000000e+00 : f32
    %35 = vector.broadcast %cst_25 : f32 to vector<8x16xf32>
    %36 = arith.cmpf oge, %34, %35 : vector<8x16xf32>
    %cst_26 = arith.constant 2.000000e-01 : f32
    %37 = vector.broadcast %cst_26 : f32 to vector<8x16xf32>
    %38 = arith.mulf %37, %34 : vector<8x16xf32>
    %39 = arith.select %36, %34, %38 : vector<8x16xi1>, vector<8x16xf32>
    %c0_27 = arith.constant 0 : index
    %c0_28 = arith.constant 0 : index
    %40 = vector.load %arg6[%c0_27, %c0_28] : memref<32x8xf32, #tpu.memory_space<vmem>>, vector<32x8xf32>
    %cst_29 = arith.constant dense<0.000000e+00> : vector<32x16xf32>
    %41 = tpu.matmul %40, %39, %cst_29 {dimension_numbers = #tpu.dot_dimension_numbers<[1], [0], [0], [1], [0, 0, 1, 1], [], []>} : vector<32x8xf32>, vector<8x16xf32>, vector<32x16xf32> -> vector<32x16xf32>
    %c0_30 = arith.constant 0 : index
    %c0_31 = arith.constant 0 : index
    %42 = vector.load %arg7[%c0_30, %c0_31] : memref<32x1xf32, #tpu.memory_space<vmem>>, vector<32x1xf32>
    %43 = vector.broadcast %42 : vector<32x1xf32> to vector<32x16xf32>
    %44 = arith.mulf %41, %43 : vector<32x16xf32>
    %c0_32 = arith.constant 0 : index
    %c0_33 = arith.constant 0 : index
    %45 = vector.load %arg8[%c0_32, %c0_33] : memref<32x1xf32, #tpu.memory_space<vmem>>, vector<32x1xf32>
    %46 = vector.broadcast %45 : vector<32x1xf32> to vector<32x16xf32>
    %47 = arith.addf %44, %46 : vector<32x16xf32>
    %48 = arith.addf %47, %1 : vector<32x16xf32>
    %cst_34 = arith.constant 0.000000e+00 : f32
    %49 = vector.broadcast %cst_34 : f32 to vector<32x16xf32>
    %50 = arith.cmpf oge, %48, %49 : vector<32x16xf32>
    %cst_35 = arith.constant 2.000000e-01 : f32
    %51 = vector.broadcast %cst_35 : f32 to vector<32x16xf32>
    %52 = arith.mulf %51, %48 : vector<32x16xf32>
    %53 = arith.select %50, %48, %52 : vector<32x16xi1>, vector<32x16xf32>
    %c0_36 = arith.constant 0 : index
    %c0_37 = arith.constant 0 : index
    %c0_38 = arith.constant 0 : index
    %54 = vector.load %arg9[%c0_36, %c0_37, %c0_38] : memref<1x32x16xf32, #tpu.memory_space<vmem>>, vector<1x32x16xf32>
    %55 = vector.shape_cast %54 : vector<1x32x16xf32> to vector<32x16xf32>
    %56 = vector.shape_cast %53 : vector<32x16xf32> to vector<1x32x16xf32>
    tpu.vector_store %arg9[%c0_36, %c0_37, %c0_38], %56 {strides = array<i32>} : memref<1x32x16xf32, #tpu.memory_space<vmem>>, vector<1x32x16xf32>,
    return
  }
  func.func @transform_0(%arg0: i32, %arg1: i32) -> (i32, i32, i32) {
    %c0_i32 = arith.constant 0 : i32
    %c0_i32_0 = arith.constant 0 : i32
    return %arg0, %c0_i32, %arg1 : i32, i32, i32
  }
  func.func @transform_1(%arg0: i32, %arg1: i32) -> (i32, i32, i32, i32) {
    %c0_i32 = arith.constant 0 : i32
    %c0_i32_0 = arith.constant 0 : i32
    %c0_i32_1 = arith.constant 0 : i32
    return %arg0, %arg1, %c0_i32, %c0_i32_0 : i32, i32, i32, i32
  }
  func.func @transform_2(%arg0: i32, %arg1: i32) -> (i32, i32) {
    %c0_i32 = arith.constant 0 : i32
    %c0_i32_0 = arith.constant 0 : i32
    %c0_i32_1 = arith.constant 0 : i32
    return %c0_i32, %c0_i32_0 : i32, i32
  }
  func.func @transform_3(%arg0: i32, %arg1: i32) -> (i32, i32, i32) {
    %c0_i32 = arith.constant 0 : i32
    %c0_i32_0 = arith.constant 0 : i32
    %c0_i32_1 = arith.constant 0 : i32
    %c0_i32_2 = arith.constant 0 : i32
    return %c0_i32, %c0_i32_0, %c0_i32_1 : i32, i32, i32
  }
  func.func @transform_4(%arg0: i32, %arg1: i32) -> (i32, i32) {
    %c0_i32 = arith.constant 0 : i32
    %c0_i32_0 = arith.constant 0 : i32
    %c0_i32_1 = arith.constant 0 : i32
    return %c0_i32, %c0_i32_0 : i32, i32
  }
  func.func @transform_5(%arg0: i32, %arg1: i32) -> (i32, i32) {
    %c0_i32 = arith.constant 0 : i32
    %c0_i32_0 = arith.constant 0 : i32
    %c0_i32_1 = arith.constant 0 : i32
    return %c0_i32, %c0_i32_0 : i32, i32
  }
  func.func @transform_6(%arg0: i32, %arg1: i32) -> (i32, i32) {
    %c0_i32 = arith.constant 0 : i32
    %c0_i32_0 = arith.constant 0 : i32
    %c0_i32_1 = arith.constant 0 : i32
    return %c0_i32, %c0_i32_0 : i32, i32
  }
  func.func @transform_7(%arg0: i32, %arg1: i32) -> (i32, i32, i32) {
    %c0_i32 = arith.constant 0 : i32
    %c0_i32_0 = arith.constant 0 : i32
    return %arg0, %c0_i32, %arg1 : i32, i32, i32
  }
}

</mosaic_0001>

<llo_original>
// kernel: _lambda_.1
$region0: #{_lambda_.1}
  #allocation0 [shape = 'u32[]', space=smem, size = 0x4, offset = 0x4, fixed_abs, tag = 'smem constant byte address 0x4 - core index']
  #allocation1 [shape = 'u32[144,128]{1,0:T(1,128)}', space=vmem, size = 0x12000, scoped, tag = 'internal scratch']
  %s0 = inlined_call_operand.vmem [shape: f32[2,32,16], index: 0, kind: input, shape index: {}]
  %s1 = inlined_call_operand.vmem [shape: f32[2,1,32,2], index: 1, kind: input, shape index: {}]
  %s2 = inlined_call_operand.vmem [shape: f32[8,32], index: 2, kind: input, shape index: {}]
  %s3 = inlined_call_operand.vmem [shape: f32[3,8,8], index: 3, kind: input, shape index: {}]
  %s4 = inlined_call_operand.vmem [shape: f32[32,8], index: 4, kind: input, shape index: {}]
  %s5 = inlined_call_operand.vmem [shape: f32[32,1], index: 5, kind: input, shape index: {}]
  %s6 = inlined_call_operand.vmem [shape: f32[32,1], index: 6, kind: input, shape index: {}]
  %s7 = inlined_call_operand.vmem [shape: f32[2,32,16], index: 7, kind: output, shape index: {}]
  %s8 = sld [smem:[#allocation0]]
  $region61: #{_lambda_.1} parent=0
    _
  %s10 = ssub.s32 1, %s8
  %s11 = scalar_select 0, %s10, %s8
  loop: start=0, step=1, limit=4
  $region2: #{_lambda_.1} parent=0 // loop_pre_header
    _
  $region3: #{_lambda_.1} parent=0 // loop_header
    %s13 = sphi 0, %s17
    %p14 = scmp.ge.s32.totalorder %s13, 4
    %s20 = sphi 0, %s32
    %s21 = sphi 0, %s28
    %s22 = sphi 0, %s20
    %s23 = sphi 0, %s21
    %s24 = sphi 0, %s22
    %s25 = sphi 0, %s23
    %s37 = sphi 0, %s39
    %s40 = sphi 0, %s37
    %s41 = sphi 0, %s40
    %s57 = sphi 0, %s41
    %s65 = sphi 0, %s67
    %s68 = sphi 0, %s65
    %s69 = sphi 0, %s68
    %s85 = sphi 0, %s69
    %s89 = sphi 0, %s89
    %s91 = sphi 0, %s89
    %s92 = sphi 0, %s91
    %s106 = sphi 0, %s92
    %s110 = sphi 0, %s110
    %s112 = sphi 0, %s110
    %s113 = sphi 0, %s112
    %s127 = sphi 0, %s113
    %s131 = sphi 0, %s131
    %s133 = sphi 0, %s131
    %s134 = sphi 0, %s133
    %s148 = sphi 0, %s134
    %s152 = sphi 0, %s152
    %s154 = sphi 0, %s152
    %s155 = sphi 0, %s154
    %s169 = sphi 0, %s155
    %s173 = sphi 0, %s173
    %s175 = sphi 0, %s173
    %s176 = sphi 0, %s175
    %s190 = sphi 0, %s176
    %s198 = sphi 0, %s200
    %s201 = sphi 0, %s198
    %s202 = sphi 0, %s201
    %s218 = sphi 0, %s202
  $region4: #{_lambda_.1} parent=0 // loop_header_branch
    %16 = sbr.rel (%p14) target = $region8
  $region5: #{_lambda_.1} parent=0 // loop_body
    %s18 = ssub.s32 %s13, 1
    %s19 = ssub.s32 %s13, 2
    %s26 = sadd.s32 1, %s21
    %p27 = scmp.ge.s32.totalorder %s26, 1
    %s28 = scalar_select %p27, 0, %s26
    %s29 = sadd.s32 1, %s20
    %s30 = scalar_select %p27, %s29, %s20
    %p31 = scmp.ge.s32.totalorder %s30, 2
    %s32 = scalar_select %p31, 0, %s30
    %s33 = ssub.s32 %s20, %s32
    %s34 = ssub.s32 %s21, %s28
    %s35 = sor.u32 %s33, %s34
    %p36 = scmp.eq.s32.totalorder %s35, 0
    %s38 = sadd.s32 %s37, 1
    %s39 = scalar_select %p36, %s37, %s38
    %p42 = pneg %p36
    %p43 = scmp.eq.s32.totalorder %s13, 1
    %p44 = por %p42, %p43
    %p45 = scmp.ne.s32.totalorder %s37, %s40
    %p46 = scmp.eq.s32.totalorder %s13, 0
    %p47 = por %p45, %p46
    %p48 = scmp.ne.s32.totalorder %s37, %s40
    %p49 = scmp.eq.s32.totalorder %s18, 1
    %p50 = por %p48, %p49
    %p51 = scmp.ne.s32.totalorder %s40, %s41
    %p52 = scmp.eq.s32.totalorder %s18, 0
    %p53 = por %p51, %p52
    %p54 = scmp.ne.s32.totalorder %s40, %s41
    %p55 = scmp.eq.s32.totalorder %s19, 1
    %p56 = por %p54, %p55
    %p58 = scmp.ne.s32.totalorder %s41, %s57
    %p59 = scmp.eq.s32.totalorder %s19, 0
    %p60 = por %p58, %p59
    %s61 = ssub.s32 %s20, %s32
    %s62 = ssub.s32 %s21, %s28
    %s63 = sor.u32 %s61, %s62
    %p64 = scmp.eq.s32.totalorder %s63, 0
    %s66 = sadd.s32 %s65, 1
    %s67 = scalar_select %p64, %s65, %s66
    %p70 = pneg %p64
    %p71 = scmp.eq.s32.totalorder %s13, 1
    %p72 = por %p70, %p71
    %p73 = scmp.ne.s32.totalorder %s65, %s68
    %p74 = scmp.eq.s32.totalorder %s13, 0
    %p75 = por %p73, %p74
    %p76 = scmp.ne.s32.totalorder %s65, %s68
    %p77 = scmp.eq.s32.totalorder %s18, 1
    %p78 = por %p76, %p77
    %p79 = scmp.ne.s32.totalorder %s68, %s69
    %p80 = scmp.eq.s32.totalorder %s18, 0
    %p81 = por %p79, %p80
    %p82 = scmp.ne.s32.totalorder %s68, %s69
    %p83 = scmp.eq.s32.totalorder %s19, 1
    %p84 = por %p82, %p83
    %p86 = scmp.ne.s32.totalorder %s69, %s85
    %p87 = scmp.eq.s32.totalorder %s19, 0
    %p88 = por %p86, %p87
    %s90 = sadd.s32 %s89, 1
    %p93 = scmp.eq.s32.totalorder %s13, 1
    %p94 = scmp.ne.s32.totalorder %s89, %s91
    %p95 = scmp.eq.s32.totalorder %s13, 0
    %p96 = por %p94, %p95
    %p97 = scmp.ne.s32.totalorder %s89, %s91
    %p98 = scmp.eq.s32.totalorder %s18, 1
    %p99 = por %p97, %p98
    %p100 = scmp.ne.s32.totalorder %s91, %s92
    %p101 = scmp.eq.s32.totalorder %s18, 0
    %p102 = por %p100, %p101
    %p103 = scmp.ne.s32.totalorder %s91, %s92
    %p104 = scmp.eq.s32.totalorder %s19, 1
    %p105 = por %p103, %p104
    %p107 = scmp.ne.s32.totalorder %s92, %s106
    %p108 = scmp.eq.s32.totalorder %s19, 0
    %p109 = por %p107, %p108
    %s111 = sadd.s32 %s110, 1
    %p114 = scmp.eq.s32.totalorder %s13, 1
    %p115 = scmp.ne.s32.totalorder %s110, %s112
    %p116 = scmp.eq.s32.totalorder %s13, 0
    %p117 = por %p115, %p116
    %p118 = scmp.ne.s32.totalorder %s110, %s112
    %p119 = scmp.eq.s32.totalorder %s18, 1
    %p120 = por %p118, %p119
    %p121 = scmp.ne.s32.totalorder %s112, %s113
    %p122 = scmp.eq.s32.totalorder %s18, 0
    %p123 = por %p121, %p122
    %p124 = scmp.ne.s32.totalorder %s112, %s113
    %p125 = scmp.eq.s32.totalorder %s19, 1
    %p126 = por %p124, %p125
    %p128 = scmp.ne.s32.totalorder %s113, %s127
    %p129 = scmp.eq.s32.totalorder %s19, 0
    %p130 = por %p128, %p129
    %s132 = sadd.s32 %s131, 1
    %p135 = scmp.eq.s32.totalorder %s13, 1
    %p136 = scmp.ne.s32.totalorder %s131, %s133
    %p137 = scmp.eq.s32.totalorder %s13, 0
    %p138 = por %p136, %p137
    %p139 = scmp.ne.s32.totalorder %s131, %s133
    %p140 = scmp.eq.s32.totalorder %s18, 1
    %p141 = por %p139, %p140
    %p142 = scmp.ne.s32.totalorder %s133, %s134
    %p143 = scmp.eq.s32.totalorder %s18, 0
    %p144 = por %p142, %p143
    %p145 = scmp.ne.s32.totalorder %s133, %s134
    %p146 = scmp.eq.s32.totalorder %s19, 1
    %p147 = por %p145, %p146
    %p149 = scmp.ne.s32.totalorder %s134, %s148
    %p150 = scmp.eq.s32.totalorder %s19, 0
    %p151 = por %p149, %p150
    %s153 = sadd.s32 %s152, 1
    %p156 = scmp.eq.s32.totalorder %s13, 1
    %p157 = scmp.ne.s32.totalorder %s152, %s154
    %p158 = scmp.eq.s32.totalorder %s13, 0
    %p159 = por %p157, %p158
    %p160 = scmp.ne.s32.totalorder %s152, %s154
    %p161 = scmp.eq.s32.totalorder %s18, 1
    %p162 = por %p160, %p161
    %p163 = scmp.ne.s32.totalorder %s154, %s155
    %p164 = scmp.eq.s32.totalorder %s18, 0
    %p165 = por %p163, %p164
    %p166 = scmp.ne.s32.totalorder %s154, %s155
    %p167 = scmp.eq.s32.totalorder %s19, 1
    %p168 = por %p166, %p167
    %p170 = scmp.ne.s32.totalorder %s155, %s169
    %p171 = scmp.eq.s32.totalorder %s19, 0
    %p172 = por %p170, %p171
    %s174 = sadd.s32 %s173, 1
    %p177 = scmp.eq.s32.totalorder %s13, 1
    %p178 = scmp.ne.s32.totalorder %s173, %s175
    %p179 = scmp.eq.s32.totalorder %s13, 0
    %p180 = por %p178, %p179
    %p181 = scmp.ne.s32.totalorder %s173, %s175
    %p182 = scmp.eq.s32.totalorder %s18, 1
    %p183 = por %p181, %p182
    %p184 = scmp.ne.s32.totalorder %s175, %s176
    %p185 = scmp.eq.s32.totalorder %s18, 0
    %p186 = por %p184, %p185
    %p187 = scmp.ne.s32.totalorder %s175, %s176
    %p188 = scmp.eq.s32.totalorder %s19, 1
    %p189 = por %p187, %p188
    %p191 = scmp.ne.s32.totalorder %s176, %s190
    %p192 = scmp.eq.s32.totalorder %s19, 0
    %p193 = por %p191, %p192
    %s194 = ssub.s32 %s20, %s32
    %s195 = ssub.s32 %s21, %s28
    %s196 = sor.u32 %s194, %s195
    %p197 = scmp.eq.s32.totalorder %s196, 0
    %s199 = sadd.s32 %s198, 1
    %s200 = scalar_select %p197, %s198, %s199
    %p203 = pneg %p197
    %p204 = scmp.eq.s32.totalorder %s13, 1
    %p205 = por %p203, %p204
    %p206 = scmp.ne.s32.totalorder %s198, %s201
    %p207 = scmp.eq.s32.totalorder %s13, 0
    %p208 = por %p206, %p207
    %p209 = scmp.ne.s32.totalorder %s198, %s201
    %p210 = scmp.eq.s32.totalorder %s18, 1
    %p211 = por %p209, %p210
    %p212 = scmp.ne.s32.totalorder %s201, %s202
    %p213 = scmp.eq.s32.totalorder %s18, 0
    %p214 = por %p212, %p213
    %p215 = scmp.ne.s32.totalorder %s201, %s202
    %p216 = scmp.eq.s32.totalorder %s19, 1
    %p217 = por %p215, %p216
    %p219 = scmp.ne.s32.totalorder %s202, %s218
    %p220 = scmp.eq.s32.totalorder %s19, 0
    %p221 = por %p219, %p220
    %p222 = scmp.le.s32.totalorder 1, %s13
    %p223 = scmp.lt.s32.totalorder %s13, 3
    %p224 = pnand %p222, %p223
    %p225 = pneg %p224
    // Predicated region
    $region9: #{_lambda_.1} parent=5 // pred_check
      _
    $region10: #{_lambda_.1} parent=5 // pred_check_branch
      %227 = sbr.rel (%p224) target = $region12
    $region11: #{_lambda_.1} parent=5 // pred_region
      %s228 = ssub.s32 %s13, 1
      // Predicated region
      $region13: #{_lambda_.1} parent=11 // pred_check
        %p229 = pneg %p102
      $region14: #{_lambda_.1} parent=11 // pred_check_branch
        %231 = sbr.rel (%p229) target = $region16
      $region15: #{_lambda_.1} parent=11 // pred_region
        _
      $region16: #{_lambda_.1} parent=11 // pred_fallthru
        _
      // Predicated region
      $region17: #{_lambda_.1} parent=11 // pred_check
        %p232 = pneg %p123
      $region18: #{_lambda_.1} parent=11 // pred_check_branch
        %234 = sbr.rel (%p232) target = $region20
      $region19: #{_lambda_.1} parent=11 // pred_region
        _
      $region20: #{_lambda_.1} parent=11 // pred_fallthru
        _
      // Predicated region
      $region21: #{_lambda_.1} parent=11 // pred_check
        %p235 = pneg %p144
      $region22: #{_lambda_.1} parent=11 // pred_check_branch
        %237 = sbr.rel (%p235) target = $region24
      $region23: #{_lambda_.1} parent=11 // pred_region
        _
      $region24: #{_lambda_.1} parent=11 // pred_fallthru
        _
      // Predicated region
      $region25: #{_lambda_.1} parent=11 // pred_check
        %p238 = pneg %p165
      $region26: #{_lambda_.1} parent=11 // pred_check_branch
        %240 = sbr.rel (%p238) target = $region28
      $region27: #{_lambda_.1} parent=11 // pred_region
        _
      $region28: #{_lambda_.1} parent=11 // pred_fallthru
        _
      // Predicated region
      $region29: #{_lambda_.1} parent=11 // pred_check
        %p241 = pneg %p186
      $region30: #{_lambda_.1} parent=11 // pred_check_branch
        %243 = sbr.rel (%p241) target = $region32
      $region31: #{_lambda_.1} parent=11 // pred_region
        _
      $region32: #{_lambda_.1} parent=11 // pred_fallthru
        _
    $region12: #{_lambda_.1} parent=5 // pred_fallthru
      _
    %p244 = scmp.lt.s32.totalorder %s13, 2
    // Predicated region
    $region33: #{_lambda_.1} parent=5 // pred_check
      %p245 = pneg %p244
    $region34: #{_lambda_.1} parent=5 // pred_check_branch
      %247 = sbr.rel (%p245) target = $region36
    $region35: #{_lambda_.1} parent=5 // pred_region
      // Predicated region
      $region37: #{_lambda_.1} parent=35 // pred_check
        %p248 = pneg %p47
      $region38: #{_lambda_.1} parent=35 // pred_check_branch
        %250 = sbr.rel (%p248) target = $region40
      $region39: #{_lambda_.1} parent=35 // pred_region
        %p251 = scmp.lt.s32.totalorder %s20, 1
        %s252 = scalar_select %p251, %s20, 1
        %p253 = scmp.lt.s32.totalorder %s21, 0
        %s254 = scalar_select %p253, %s21, 0
        %s255 = smul.addr %s252, 4
        %s256 = sadd.s32 %s254, %s255
        %s257 = smul.addr %s256, 8
        %s258 = scalar_lea.vmem %s0, %s257
      $region40: #{_lambda_.1} parent=35 // pred_fallthru
        _
      // Predicated region
      $region41: #{_lambda_.1} parent=35 // pred_check
        %p259 = pneg %p75
      $region42: #{_lambda_.1} parent=35 // pred_check_branch
        %261 = sbr.rel (%p259) target = $region44
      $region43: #{_lambda_.1} parent=35 // pred_region
        %p262 = scmp.lt.s32.totalorder %s20, 1
        %s263 = scalar_select %p262, %s20, 1
        %p264 = scmp.lt.s32.totalorder %s21, 0
        %s265 = scalar_select %p264, %s21, 0
        %s266 = smul.addr %s265, 4
        %s267 = smul.addr %s263, 4
        %s268 = sadd.s32 %s266, %s267
        %s269 = smul.addr %s268, 8
        %s270 = scalar_lea.vmem %s1, %s269
      $region44: #{_lambda_.1} parent=35 // pred_fallthru
        _
    $region36: #{_lambda_.1} parent=5 // pred_fallthru
      _
    %p271 = scmp.le.s32.totalorder 1, %s13
    %p272 = scmp.lt.s32.totalorder %s13, 3
    %p273 = pnand %p271, %p272
    %p274 = pneg %p273
    // Predicated region
    $region45: #{_lambda_.1} parent=5 // pred_check
      _
    $region46: #{_lambda_.1} parent=5 // pred_check_branch
      %276 = sbr.rel (%p273) target = $region48
    $region47: #{_lambda_.1} parent=5 // pred_region
      %s277 = ssub.s32 %s13, 1
      %p278 = scmp.lt.s32.totalorder %s22, 1
      %s279 = scalar_select %p278, %s22, 1
      %p280 = scmp.lt.s32.totalorder %s23, 0
      %s281 = scalar_select %p280, %s23, 0
      %s282 = smul.addr %s279, 4
      %s283 = sadd.s32 %s281, %s282
      %s284 = smul.addr %s283, 8
      %s285 = scalar_lea.vmem %s0, %s284
      %p286 = pneg %p53
      %p287 = pneg %p50
      %p288 = scmp.lt.s32.totalorder %s22, 1
      %s289 = scalar_select %p288, %s22, 1
      %p290 = scmp.lt.s32.totalorder %s23, 0
      %s291 = scalar_select %p290, %s23, 0
      %s292 = smul.addr %s291, 4
      %s293 = smul.addr %s289, 4
      %s294 = sadd.s32 %s292, %s293
      %s295 = smul.addr %s294, 8
      %s296 = scalar_lea.vmem %s1, %s295
      %p297 = pneg %p81
      %p298 = pneg %p78
      %p299 = pneg %p102
      %p300 = pneg %p99
      %p301 = pneg %p123
      %p302 = pneg %p120
      %p303 = pneg %p144
      %p304 = pneg %p141
      %p305 = pneg %p165
      %p306 = pneg %p162
      %p307 = pneg %p186
      %p308 = pneg %p183
      %p309 = pneg %p214
      %p310 = pneg %p211
      %p311 = scmp.lt.s32.totalorder %s22, 1
      %s312 = scalar_select %p311, %s22, 1
      %p313 = scmp.lt.s32.totalorder %s23, 0
      %s314 = scalar_select %p313, %s23, 0
      %s315 = smul.addr %s312, 4
      %s316 = sadd.s32 %s314, %s315
      %s317 = smul.addr %s316, 8
      %s318 = scalar_lea.vmem %s7, %s317
      %p319 = scmp.lt.s32.totalorder %s22, 1
      %s320 = scalar_select %p319, %s22, 1
      %p321 = scmp.lt.s32.totalorder %s23, 0
      %s322 = scalar_select %p321, %s23, 0
      %s323 = smul.addr %s320, 4
      %s324 = sadd.s32 %s322, %s323
      %s325 = smul.addr %s324, 8
      %s326 = scalar_lea.vmem %s0, %s325
      %p327 = scmp.lt.s32.totalorder %s22, 1
      %s328 = scalar_select %p327, %s22, 1
      %p329 = scmp.lt.s32.totalorder %s23, 0
      %s330 = scalar_select %p329, %s23, 0
      %s331 = smul.addr %s330, 4
      %s332 = smul.addr %s328, 4
      %s333 = sadd.s32 %s331, %s332
      %s334 = smul.addr %s333, 8
      %s335 = scalar_lea.vmem %s1, %s334
      %p336 = scmp.lt.s32.totalorder %s22, 1
      %s337 = scalar_select %p336, %s22, 1
      %p338 = scmp.lt.s32.totalorder %s23, 0
      %s339 = scalar_select %p338, %s23, 0
      %s340 = smul.addr %s337, 4
      %s341 = sadd.s32 %s339, %s340
      %s342 = smul.addr %s341, 8
      %s343 = scalar_lea.vmem %s7, %s342
      %v344 = vld [vmem:[%s326] sm:$0xff]
      %v345 = vld [vmem:[%s326 + $0x8] sm:$0xff]
      %v346 = vld [vmem:[%s326 + $0x10] sm:$0xff]
      %v347 = vld [vmem:[%s326 + $0x18] sm:$0xff]
      %v348 = vld [vmem:[%s335] sm:$0xff]
      %v349 = vld [vmem:[%s335 + $0x8] sm:$0xff]
      %v350 = vld [vmem:[%s335 + $0x10] sm:$0xff]
      %v351 = vld [vmem:[%s335 + $0x18] sm:$0xff]
      %v352 = vld [vmem:[%s2] sm:$0xff]
      %vm353 = vcmask 261120
      %v355 = vsel %vm353, %v352, 0
      %357 = vmatprep.subr.mxu0 0.0
      %358 = vmatpush1.msra.mxu0 %v344
      %359 = vmatprep.subr.mxu0 0.0
      %360 = vmatpush1.msra.mxu0 %v345
      %361 = vmatprep.subr.mxu0 0.0
      %362 = vmatpush1.msra.mxu0 %v346
      %363 = vmatprep.subr.mxu0 0.0
      %364 = vmatpush1.msra.mxu0 %v347
      %365 = vmatprep.subr.mxu0 0.0
      %366 = vmatpush1.msra.mxu0 0.0
      %367 = vmatprep.subr.mxu0 0.0
      %368 = vmatpush1.msra.mxu0 0.0
      %369 = vmatprep.subr.mxu0 0.0
      %370 = vmatpush1.msra.mxu0 0.0
      %371 = vmatprep.subr.mxu0 0.0
      %372 = vmatpush1.msra.mxu0 0.0
      %373 = vmatprep.subr.mxu0 0.0
      %374 = vmatpush1.msra.mxu0 0.0
      %375 = vmatprep.subr.mxu0 0.0
      %376 = vmatpush1.msra.mxu0 0.0
      %377 = vmatprep.subr.mxu0 0.0
      %378 = vmatpush1.msra.mxu0 0.0
      %379 = vmatprep.subr.mxu0 0.0
      %380 = vmatpush1.msra.mxu0 0.0
      %381 = vmatprep.subr.mxu0 0.0
      %382 = vmatpush1.msra.mxu0 0.0
      %383 = vmatprep.subr.mxu0 0.0
      %384 = vmatpush1.msra.mxu0 0.0
      %385 = vmatprep.subr.mxu0 0.0
      %386 = vmatpush1.msra.mxu0 0.0
      %387 = vmatprep.subr.mxu0 0.0
      %388 = vmatpush1.msra.mxu0 0.0
      %389 = vmatprep.subr.mxu0 0.0
      %390 = vmatpush1.msra.mxu0 0.0
      %391 = vmatprep.subr.mxu0 0.0
      %392 = vmatpush1.msra.mxu0 0.0
      %393 = vmatprep.subr.mxu0 0.0
      %394 = vmatpush1.msra.mxu0 0.0
      %395 = vmatprep.subr.mxu0 0.0
      %396 = vmatpush1.msra.mxu0 0.0
      %397 = vmatprep.subr.mxu0 0.0
      %398 = vmatpush1.msra.mxu0 0.0
      %399 = vmatprep.subr.mxu0 0.0
      %400 = vmatpush1.msra.mxu0 0.0
      %401 = vmatprep.subr.mxu0 0.0
      %402 = vmatpush1.msra.mxu0 0.0
      %403 = vmatprep.subr.mxu0 0.0
      %404 = vmatpush1.msra.mxu0 0.0
      %405 = vmatprep.subr.mxu0 0.0
      %406 = vmatpush1.msra.mxu0 0.0
      %407 = vmatprep.subr.mxu0 0.0
      %408 = vmatpush1.msra.mxu0 0.0
      %409 = vmatprep.subr.mxu0 0.0
      %410 = vmatpush1.msra.mxu0 0.0
      %411 = vmatprep.subr.mxu0 0.0
      %412 = vmatpush1.msra.mxu0 0.0
      %413 = vmatprep.subr.mxu0 0.0
      %414 = vmatpush1.msra.mxu0 0.0
      %415 = vmatprep.subr.mxu0 0.0
      %416 = vmatpush1.msra.mxu0 0.0
      %417 = vmatprep.subr.mxu0 0.0
      %418 = vmatpush1.msra.mxu0 0.0
      %419 = vmatprep.subr.mxu0 0.0
      %420 = vmatpush1.msra.mxu0 0.0
      %421 = vmatprep.mubr.f32.mxu0 0.0
      %422 = vmatmul.mubr.f32.gmra.mrb[0].mxu0 %v355
      %v423 = vpop.f32.mrb[0].mxu0
      %v424 = vadd.f32 0.0, %v423
      %v425 = vpop.f32.mrb[0].mxu0
      %426 = vdwg.mxu0
      %vm427 = vcmp.ge.f32.partialorder %v424, 0.0
      %v428 = vmul.f32 %v424, 0.2
      %v429 = vsel %vm427, %v424, %v428
      %430 = vmatprep.subr.mxu0 0.0
      %431 = vmatpush1.msra.mxu0 %v348
      %432 = vmatprep.subr.mxu0 0.0
      %433 = vmatpush1.msra.mxu0 %v349
      %434 = vmatprep.subr.mxu0 0.0
      %435 = vmatpush1.msra.mxu0 %v350
      %436 = vmatprep.subr.mxu0 0.0
      %437 = vmatpush1.msra.mxu0 %v351
      %438 = vmatprep.subr.mxu0 0.0
      %439 = vmatpush1.msra.mxu0 0.0
      %440 = vmatprep.subr.mxu0 0.0
      %441 = vmatpush1.msra.mxu0 0.0
      %442 = vmatprep.subr.mxu0 0.0
      %443 = vmatpush1.msra.mxu0 0.0
      %444 = vmatprep.subr.mxu0 0.0
      %445 = vmatpush1.msra.mxu0 0.0
      %446 = vmatprep.subr.mxu0 0.0
      %447 = vmatpush1.msra.mxu0 0.0
      %448 = vmatprep.subr.mxu0 0.0
      %449 = vmatpush1.msra.mxu0 0.0
      %450 = vmatprep.subr.mxu0 0.0
      %451 = vmatpush1.msra.mxu0 0.0
      %452 = vmatprep.subr.mxu0 0.0
      %453 = vmatpush1.msra.mxu0 0.0
      %454 = vmatprep.subr.mxu0 0.0
      %455 = vmatpush1.msra.mxu0 0.0
      %456 = vmatprep.subr.mxu0 0.0
      %457 = vmatpush1.msra.mxu0 0.0
      %458 = vmatprep.subr.mxu0 0.0
      %459 = vmatpush1.msra.mxu0 0.0
      %460 = vmatprep.subr.mxu0 0.0
      %461 = vmatpush1.msra.mxu0 0.0
      %462 = vmatprep.subr.mxu0 0.0
      %463 = vmatpush1.msra.mxu0 0.0
      %464 = vmatprep.subr.mxu0 0.0
      %465 = vmatpush1.msra.mxu0 0.0
      %466 = vmatprep.subr.mxu0 0.0
      %467 = vmatpush1.msra.mxu0 0.0
      %468 = vmatprep.subr.mxu0 0.0
      %469 = vmatpush1.msra.mxu0 0.0
      %470 = vmatprep.subr.mxu0 0.0
      %471 = vmatpush1.msra.mxu0 0.0
      %472 = vmatprep.subr.mxu0 0.0
      %473 = vmatpush1.msra.mxu0 0.0
      %474 = vmatprep.subr.mxu0 0.0
      %475 = vmatpush1.msra.mxu0 0.0
      %476 = vmatprep.subr.mxu0 0.0
      %477 = vmatpush1.msra.mxu0 0.0
      %478 = vmatprep.subr.mxu0 0.0
      %479 = vmatpush1.msra.mxu0 0.0
      %480 = vmatprep.subr.mxu0 0.0
      %481 = vmatpush1.msra.mxu0 0.0
      %482 = vmatprep.subr.mxu0 0.0
      %483 = vmatpush1.msra.mxu0 0.0
      %484 = vmatprep.subr.mxu0 0.0
      %485 = vmatpush1.msra.mxu0 0.0
      %486 = vmatprep.subr.mxu0 0.0
      %487 = vmatpush1.msra.mxu0 0.0
      %488 = vmatprep.subr.mxu0 0.0
      %489 = vmatpush1.msra.mxu0 0.0
      %490 = vmatprep.subr.mxu0 0.0
      %491 = vmatpush1.msra.mxu0 0.0
      %492 = vmatprep.subr.mxu0 0.0
      %493 = vmatpush1.msra.mxu0 0.0
      %494 = vmatprep.mubr.f32.mxu0 0.0
      %495 = vmatmul.mubr.f32.gmra.mrb[0].mxu0 %v355
      %v496 = vpop.f32.mrb[0].mxu0
      %v497 = vadd.f32 0.0, %v496
      %v498 = vpop.f32.mrb[0].mxu0
      %499 = vdwg.mxu0
      %vm500 = vcmp.ge.f32.partialorder %v497, 0.0
      %v501 = vmul.f32 %v497, 0.2
      %v502 = vsel %vm500, %v497, %v501
      %504 = vrot.lane.b32.xlu0 %v429, 1
      %v505 = vpop.permute.xlu0 %504
      %vm507 = vcmask 7168
      %v508 = vsel %vm507, %v502, %v505
      %509 = vrot.lane.b32.xlu0 %v429, 127
      %v510 = vpop.permute.xlu0 %509
      %513 = vrot.lane.b32.xlu0 %v502, 14
      %v514 = vpop.permute.xlu0 %513
      %vm516 = vcmask 121856
      %v517 = vsel %vm516, %v510, %v514
      %v518 = vld [vmem:[%s3] sm:$0xff]
      %s519 = scalar_lea.vmem %s3, 8
      %v520 = vld [vmem:[%s519] sm:$0xff]
      %vm521 = vcmask 64512
      %v523 = vsel %vm521, %v520, 0
      %525 = vmatprep.subr.mxu0 0.0
      %526 = vmatpush1.msra.mxu0 %v429
      %527 = vmatprep.subr.mxu0 0.0
      %528 = vmatpush1.msra.mxu0 0.0
      %529 = vmatprep.subr.mxu0 0.0
      %530 = vmatpush1.msra.mxu0 0.0
      %531 = vmatprep.subr.mxu0 0.0
      %532 = vmatpush1.msra.mxu0 0.0
      %533 = vmatprep.subr.mxu0 0.0
      %534 = vmatpush1.msra.mxu0 0.0
      %535 = vmatprep.subr.mxu0 0.0
      %536 = vmatpush1.msra.mxu0 0.0
      %537 = vmatprep.subr.mxu0 0.0
      %538 = vmatpush1.msra.mxu0 0.0
      %539 = vmatprep.subr.mxu0 0.0
      %540 = vmatpush1.msra.mxu0 0.0
      %541 = vmatprep.subr.mxu0 0.0
      %542 = vmatpush1.msra.mxu0 0.0
      %543 = vmatprep.subr.mxu0 0.0
      %544 = vmatpush1.msra.mxu0 0.0
      %545 = vmatprep.subr.mxu0 0.0
      %546 = vmatpush1.msra.mxu0 0.0
      %547 = vmatprep.subr.mxu0 0.0
      %548 = vmatpush1.msra.mxu0 0.0
      %549 = vmatprep.subr.mxu0 0.0
      %550 = vmatpush1.msra.mxu0 0.0
      %551 = vmatprep.subr.mxu0 0.0
      %552 = vmatpush1.msra.mxu0 0.0
      %553 = vmatprep.subr.mxu0 0.0
      %554 = vmatpush1.msra.mxu0 0.0
      %555 = vmatprep.subr.mxu0 0.0
      %556 = vmatpush1.msra.mxu0 0.0
      %557 = vmatprep.subr.mxu0 0.0
      %558 = vmatpush1.msra.mxu0 0.0
      %559 = vmatprep.subr.mxu0 0.0
      %560 = vmatpush1.msra.mxu0 0.0
      %561 = vmatprep.subr.mxu0 0.0
      %562 = vmatpush1.msra.mxu0 0.0
      %563 = vmatprep.subr.mxu0 0.0
      %564 = vmatpush1.msra.mxu0 0.0
      %565 = vmatprep.subr.mxu0 0.0
      %566 = vmatpush1.msra.mxu0 0.0
      %567 = vmatprep.subr.mxu0 0.0
      %568 = vmatpush1.msra.mxu0 0.0
      %569 = vmatprep.subr.mxu0 0.0
      %570 = vmatpush1.msra.mxu0 0.0
      %571 = vmatprep.subr.mxu0 0.0
      %572 = vmatpush1.msra.mxu0 0.0
      %573 = vmatprep.subr.mxu0 0.0
      %574 = vmatpush1.msra.mxu0 0.0
      %575 = vmatprep.subr.mxu0 0.0
      %576 = vmatpush1.msra.mxu0 0.0
      %577 = vmatprep.subr.mxu0 0.0
      %578 = vmatpush1.msra.mxu0 0.0
      %579 = vmatprep.subr.mxu0 0.0
      %580 = vmatpush1.msra.mxu0 0.0
      %581 = vmatprep.subr.mxu0 0.0
      %582 = vmatpush1.msra.mxu0 0.0
      %583 = vmatprep.subr.mxu0 0.0
      %584 = vmatpush1.msra.mxu0 0.0
      %585 = vmatprep.subr.mxu0 0.0
      %586 = vmatpush1.msra.mxu0 0.0
      %587 = vmatprep.subr.mxu0 0.0
      %588 = vmatpush1.msra.mxu0 0.0
      %589 = vmatprep.mubr.f32.mxu0 0.0
      %590 = vmatmul.mubr.f32.gmra.mrb[0].mxu0 %v523
      %v591 = vpop.f32.mrb[0].mxu0
      %v592 = vadd.f32 0.0, %v591
      %v593 = vpop.f32.mrb[0].mxu0
      %594 = vdwg.mxu0
      %v596 = vsel %vm521, %v518, 0
      %598 = vmatprep.subr.mxu0 0.0
      %599 = vmatpush1.msra.mxu0 %v508
      %600 = vmatprep.subr.mxu0 0.0
      %601 = vmatpush1.msra.mxu0 0.0
      %602 = vmatprep.subr.mxu0 0.0
      %603 = vmatpush1.msra.mxu0 0.0
      %604 = vmatprep.subr.mxu0 0.0
      %605 = vmatpush1.msra.mxu0 0.0
      %606 = vmatprep.subr.mxu0 0.0
      %607 = vmatpush1.msra.mxu0 0.0
      %608 = vmatprep.subr.mxu0 0.0
      %609 = vmatpush1.msra.mxu0 0.0
      %610 = vmatprep.subr.mxu0 0.0
      %611 = vmatpush1.msra.mxu0 0.0
      %612 = vmatprep.subr.mxu0 0.0
      %613 = vmatpush1.msra.mxu0 0.0
      %614 = vmatprep.subr.mxu0 0.0
      %615 = vmatpush1.msra.mxu0 0.0
      %616 = vmatprep.subr.mxu0 0.0
      %617 = vmatpush1.msra.mxu0 0.0
      %618 = vmatprep.subr.mxu0 0.0
      %619 = vmatpush1.msra.mxu0 0.0
      %620 = vmatprep.subr.mxu0 0.0
      %621 = vmatpush1.msra.mxu0 0.0
      %622 = vmatprep.subr.mxu0 0.0
      %623 = vmatpush1.msra.mxu0 0.0
      %624 = vmatprep.subr.mxu0 0.0
      %625 = vmatpush1.msra.mxu0 0.0
      %626 = vmatprep.subr.mxu0 0.0
      %627 = vmatpush1.msra.mxu0 0.0
      %628 = vmatprep.subr.mxu0 0.0
      %629 = vmatpush1.msra.mxu0 0.0
      %630 = vmatprep.subr.mxu0 0.0
      %631 = vmatpush1.msra.mxu0 0.0
      %632 = vmatprep.subr.mxu0 0.0
      %633 = vmatpush1.msra.mxu0 0.0
      %634 = vmatprep.subr.mxu0 0.0
      %635 = vmatpush1.msra.mxu0 0.0
      %636 = vmatprep.subr.mxu0 0.0
      %637 = vmatpush1.msra.mxu0 0.0
      %638 = vmatprep.subr.mxu0 0.0
      %639 = vmatpush1.msra.mxu0 0.0
      %640 = vmatprep.subr.mxu0 0.0
      %641 = vmatpush1.msra.mxu0 0.0
      %642 = vmatprep.subr.mxu0 0.0
      %643 = vmatpush1.msra.mxu0 0.0
      %644 = vmatprep.subr.mxu0 0.0
      %645 = vmatpush1.msra.mxu0 0.0
      %646 = vmatprep.subr.mxu0 0.0
      %647 = vmatpush1.msra.mxu0 0.0
      %648 = vmatprep.subr.mxu0 0.0
      %649 = vmatpush1.msra.mxu0 0.0
      %650 = vmatprep.subr.mxu0 0.0
      %651 = vmatpush1.msra.mxu0 0.0
      %652 = vmatprep.subr.mxu0 0.0
      %653 = vmatpush1.msra.mxu0 0.0
      %654 = vmatprep.subr.mxu0 0.0
      %655 = vmatpush1.msra.mxu0 0.0
      %656 = vmatprep.subr.mxu0 0.0
      %657 = vmatpush1.msra.mxu0 0.0
      %658 = vmatprep.subr.mxu0 0.0
      %659 = vmatpush1.msra.mxu0 0.0
      %660 = vmatprep.subr.mxu0 0.0
      %661 = vmatpush1.msra.mxu0 0.0
      %662 = vmatprep.mubr.f32.mxu0 0.0
      %663 = vmatmul.mubr.f32.gmra.mrb[0].mxu0 %v596
      %v664 = vpop.f32.mrb[0].mxu0
      %v665 = vadd.f32 %v592, %v664
      %v666 = vpop.f32.mrb[0].mxu0
      %667 = vdwg.mxu0
      %s668 = scalar_lea.vmem %s3, 16
      %v669 = vld [vmem:[%s668] sm:$0xff]
      %v671 = vsel %vm521, %v669, 0
      %673 = vmatprep.subr.mxu0 0.0
      %674 = vmatpush1.msra.mxu0 %v517
      %675 = vmatprep.subr.mxu0 0.0
      %676 = vmatpush1.msra.mxu0 0.0
      %677 = vmatprep.subr.mxu0 0.0
      %678 = vmatpush1.msra.mxu0 0.0
      %679 = vmatprep.subr.mxu0 0.0
      %680 = vmatpush1.msra.mxu0 0.0
      %681 = vmatprep.subr.mxu0 0.0
      %682 = vmatpush1.msra.mxu0 0.0
      %683 = vmatprep.subr.mxu0 0.0
      %684 = vmatpush1.msra.mxu0 0.0
      %685 = vmatprep.subr.mxu0 0.0
      %686 = vmatpush1.msra.mxu0 0.0
      %687 = vmatprep.subr.mxu0 0.0
      %688 = vmatpush1.msra.mxu0 0.0
      %689 = vmatprep.subr.mxu0 0.0
      %690 = vmatpush1.msra.mxu0 0.0
      %691 = vmatprep.subr.mxu0 0.0
      %692 = vmatpush1.msra.mxu0 0.0
      %693 = vmatprep.subr.mxu0 0.0
      %694 = vmatpush1.msra.mxu0 0.0
      %695 = vmatprep.subr.mxu0 0.0
      %696 = vmatpush1.msra.mxu0 0.0
      %697 = vmatprep.subr.mxu0 0.0
      %698 = vmatpush1.msra.mxu0 0.0
      %699 = vmatprep.subr.mxu0 0.0
      %700 = vmatpush1.msra.mxu0 0.0
      %701 = vmatprep.subr.mxu0 0.0
      %702 = vmatpush1.msra.mxu0 0.0
      %703 = vmatprep.subr.mxu0 0.0
      %704 = vmatpush1.msra.mxu0 0.0
      %705 = vmatprep.subr.mxu0 0.0
      %706 = vmatpush1.msra.mxu0 0.0
      %707 = vmatprep.subr.mxu0 0.0
      %708 = vmatpush1.msra.mxu0 0.0
      %709 = vmatprep.subr.mxu0 0.0
      %710 = vmatpush1.msra.mxu0 0.0
      %711 = vmatprep.subr.mxu0 0.0
      %712 = vmatpush1.msra.mxu0 0.0
      %713 = vmatprep.subr.mxu0 0.0
      %714 = vmatpush1.msra.mxu0 0.0
      %715 = vmatprep.subr.mxu0 0.0
      %716 = vmatpush1.msra.mxu0 0.0
      %717 = vmatprep.subr.mxu0 0.0
      %718 = vmatpush1.msra.mxu0 0.0
      %719 = vmatprep.subr.mxu0 0.0
      %720 = vmatpush1.msra.mxu0 0.0
      %721 = vmatprep.subr.mxu0 0.0
      %722 = vmatpush1.msra.mxu0 0.0
      %723 = vmatprep.subr.mxu0 0.0
      %724 = vmatpush1.msra.mxu0 0.0
      %725 = vmatprep.subr.mxu0 0.0
      %726 = vmatpush1.msra.mxu0 0.0
      %727 = vmatprep.subr.mxu0 0.0
      %728 = vmatpush1.msra.mxu0 0.0
      %729 = vmatprep.subr.mxu0 0.0
      %730 = vmatpush1.msra.mxu0 0.0
      %731 = vmatprep.subr.mxu0 0.0
      %732 = vmatpush1.msra.mxu0 0.0
      %733 = vmatprep.subr.mxu0 0.0
      %734 = vmatpush1.msra.mxu0 0.0
      %735 = vmatprep.subr.mxu0 0.0
      %736 = vmatpush1.msra.mxu0 0.0
      %737 = vmatprep.mubr.f32.mxu0 0.0
      %738 = vmatmul.mubr.f32.gmra.mrb[0].mxu0 %v671
      %v739 = vpop.f32.mrb[0].mxu0
      %v740 = vadd.f32 0.0, %v739
      %v741 = vpop.f32.mrb[0].mxu0
      %742 = vdwg.mxu0
      %v743 = vadd.f32 %v665, %v740
      %vm744 = vcmp.ge.f32.partialorder %v743, 0.0
      %v745 = vmul.f32 %v743, 0.2
      %v746 = vsel %vm744, %v743, %v745
      %v747 = vld [vmem:[%s4] sm:$0xff]
      %v748 = vld [vmem:[%s4 + $0x8] sm:$0xff]
      %v749 = vld [vmem:[%s4 + $0x10] sm:$0xff]
      %v750 = vld [vmem:[%s4 + $0x18] sm:$0xff]
      %v752 = vsel %vm521, %v747, 0
      %v755 = vsel %vm521, %v748, 0
      %v758 = vsel %vm521, %v749, 0
      %v761 = vsel %vm521, %v750, 0
      %763 = vmatprep.subr.mxu0 0.0
      %764 = vmatpush1.msra.mxu0 %v746
      %765 = vmatprep.subr.mxu0 0.0
      %766 = vmatpush1.msra.mxu0 0.0
      %767 = vmatprep.subr.mxu0 0.0
      %768 = vmatpush1.msra.mxu0 0.0
      %769 = vmatprep.subr.mxu0 0.0
      %770 = vmatpush1.msra.mxu0 0.0
      %771 = vmatprep.subr.mxu0 0.0
      %772 = vmatpush1.msra.mxu0 0.0
      %773 = vmatprep.subr.mxu0 0.0
      %774 = vmatpush1.msra.mxu0 0.0
      %775 = vmatprep.subr.mxu0 0.0
      %776 = vmatpush1.msra.mxu0 0.0
      %777 = vmatprep.subr.mxu0 0.0
      %778 = vmatpush1.msra.mxu0 0.0
      %779 = vmatprep.subr.mxu0 0.0
      %780 = vmatpush1.msra.mxu0 0.0
      %781 = vmatprep.subr.mxu0 0.0
      %782 = vmatpush1.msra.mxu0 0.0
      %783 = vmatprep.subr.mxu0 0.0
      %784 = vmatpush1.msra.mxu0 0.0
      %785 = vmatprep.subr.mxu0 0.0
      %786 = vmatpush1.msra.mxu0 0.0
      %787 = vmatprep.subr.mxu0 0.0
      %788 = vmatpush1.msra.mxu0 0.0
      %789 = vmatprep.subr.mxu0 0.0
      %790 = vmatpush1.msra.mxu0 0.0
      %791 = vmatprep.subr.mxu0 0.0
      %792 = vmatpush1.msra.mxu0 0.0
      %793 = vmatprep.subr.mxu0 0.0
      %794 = vmatpush1.msra.mxu0 0.0
      %795 = vmatprep.subr.mxu0 0.0
      %796 = vmatpush1.msra.mxu0 0.0
      %797 = vmatprep.subr.mxu0 0.0
      %798 = vmatpush1.msra.mxu0 0.0
      %799 = vmatprep.subr.mxu0 0.0
      %800 = vmatpush1.msra.mxu0 0.0
      %801 = vmatprep.subr.mxu0 0.0
      %802 = vmatpush1.msra.mxu0 0.0
      %803 = vmatprep.subr.mxu0 0.0
      %804 = vmatpush1.msra.mxu0 0.0
      %805 = vmatprep.subr.mxu0 0.0
      %806 = vmatpush1.msra.mxu0 0.0
      %807 = vmatprep.subr.mxu0 0.0
      %808 = vmatpush1.msra.mxu0 0.0
      %809 = vmatprep.subr.mxu0 0.0
      %810 = vmatpush1.msra.mxu0 0.0
      %811 = vmatprep.subr.mxu0 0.0
      %812 = vmatpush1.msra.mxu0 0.0
      %813 = vmatprep.subr.mxu0 0.0
      %814 = vmatpush1.msra.mxu0 0.0
      %815 = vmatprep.subr.mxu0 0.0
      %816 = vmatpush1.msra.mxu0 0.0
      %817 = vmatprep.subr.mxu0 0.0
      %818 = vmatpush1.msra.mxu0 0.0
      %819 = vmatprep.subr.mxu0 0.0
      %820 = vmatpush1.msra.mxu0 0.0
      %821 = vmatprep.subr.mxu0 0.0
      %822 = vmatpush1.msra.mxu0 0.0
      %823 = vmatprep.subr.mxu0 0.0
      %824 = vmatpush1.msra.mxu0 0.0
      %825 = vmatprep.subr.mxu0 0.0
      %826 = vmatpush1.msra.mxu0 0.0
      %827 = vmatprep.mubr.f32.mxu0 0.0
      %828 = vmatmul.mubr.f32.gmra.mrb[0].mxu0 %v752
      %v829 = vpop.f32.mrb[0].mxu0
      %v830 = vadd.f32 0.0, %v829
      %v831 = vpop.f32.mrb[0].mxu0
      %832 = vmatprep.mubr.f32.mxu0 0.0
      %833 = vmatmul.mubr.f32.gmra.mrb[0].mxu0 %v755
      %v834 = vpop.f32.mrb[0].mxu0
      %v835 = vadd.f32 0.0, %v834
      %v836 = vpop.f32.mrb[0].mxu0
      %837 = vmatprep.mubr.f32.mxu0 0.0
      %838 = vmatmul.mubr.f32.gmra.mrb[0].mxu0 %v758
      %v839 = vpop.f32.mrb[0].mxu0
      %v840 = vadd.f32 0.0, %v839
      %v841 = vpop.f32.mrb[0].mxu0
      %842 = vmatprep.mubr.f32.mxu0 0.0
      %843 = vmatmul.mubr.f32.gmra.mrb[0].mxu0 %v761
      %v844 = vpop.f32.mrb[0].mxu0
      %v845 = vadd.f32 0.0, %v844
      %v846 = vpop.f32.mrb[0].mxu0
      %847 = vdwg.mxu0
      %v848 = vld [vmem:[%s5] sm:$0xff]
      %v849 = vld [vmem:[%s5 + $0x8] sm:$0xff]
      %v850 = vld [vmem:[%s5 + $0x10] sm:$0xff]
      %v851 = vld [vmem:[%s5 + $0x18] sm:$0xff]
      %853 = vset.pattern.permute.xlu0 0
      %854 = vperm.xlu0 %853, %v848
      %v855 = vpop.permute.xlu0 %854
      %858 = vset.pattern.permute.xlu0 0
      %859 = vperm.xlu0 %858, %v849
      %v860 = vpop.permute.xlu0 %859
      %863 = vset.pattern.permute.xlu0 0
      %864 = vperm.xlu0 %863, %v850
      %v865 = vpop.permute.xlu0 %864
      %868 = vset.pattern.permute.xlu0 0
      %869 = vperm.xlu0 %868, %v851
      %v870 = vpop.permute.xlu0 %869
      %v872 = vmul.f32 %v830, %v855
      %v873 = vmul.f32 %v835, %v860
      %v874 = vmul.f32 %v840, %v865
      %v875 = vmul.f32 %v845, %v870
      %v876 = vld [vmem:[%s6] sm:$0xff]
      %v877 = vld [vmem:[%s6 + $0x8] sm:$0xff]
      %v878 = vld [vmem:[%s6 + $0x10] sm:$0xff]
      %v879 = vld [vmem:[%s6 + $0x18] sm:$0xff]
      %881 = vset.pattern.permute.xlu0 0
      %882 = vperm.xlu0 %881, %v876
      %v883 = vpop.permute.xlu0 %882
      %886 = vset.pattern.permute.xlu0 0
      %887 = vperm.xlu0 %886, %v877
      %v888 = vpop.permute.xlu0 %887
      %891 = vset.pattern.permute.xlu0 0
      %892 = vperm.xlu0 %891, %v878
      %v893 = vpop.permute.xlu0 %892
      %896 = vset.pattern.permute.xlu0 0
      %897 = vperm.xlu0 %896, %v879
      %v898 = vpop.permute.xlu0 %897
      %v900 = vadd.f32 %v872, %v883
      %v901 = vadd.f32 %v873, %v888
      %v902 = vadd.f32 %v874, %v893
      %v903 = vadd.f32 %v875, %v898
      %v904 = vadd.f32 %v900, %v344
      %v905 = vadd.f32 %v901, %v345
      %v906 = vadd.f32 %v902, %v346
      %v907 = vadd.f32 %v903, %v347
      %vm908 = vcmp.ge.f32.partialorder %v904, 0.0
      %vm909 = vcmp.ge.f32.partialorder %v905, 0.0
      %vm910 = vcmp.ge.f32.partialorder %v906, 0.0
      %vm911 = vcmp.ge.f32.partialorder %v907, 0.0
      %v912 = vmul.f32 %v904, 0.2
      %v913 = vmul.f32 %v905, 0.2
      %v914 = vmul.f32 %v906, 0.2
      %v915 = vmul.f32 %v907, 0.2
      %v916 = vsel %vm908, %v904, %v912
      %v917 = vsel %vm909, %v905, %v913
      %v918 = vsel %vm910, %v906, %v914
      %v919 = vsel %vm911, %v907, %v915
      %vm920 = vcmask 130048
      %921 = vst.msk [vmem:[%s343] sm:$0xff] %vm920, %v916
      %922 = vst.msk [vmem:[%s343 + $0x8] sm:$0xff] %vm920, %v917
      %923 = vst.msk [vmem:[%s343 + $0x10] sm:$0xff] %vm920, %v918
      %924 = vst.msk [vmem:[%s343 + $0x18] sm:$0xff] %vm920, %v919
      %p925 = scmp.lt.s32.totalorder %s22, 1
      %s926 = scalar_select %p925, %s22, 1
      %p927 = scmp.lt.s32.totalorder %s23, 0
      %s928 = scalar_select %p927, %s23, 0
      %s929 = smul.addr %s926, 4
      %s930 = sadd.s32 %s928, %s929
      %s931 = smul.addr %s930, 8
      %s932 = scalar_lea.vmem %s7, %s931
      // Predicated region
      $region49: #{_lambda_.1} parent=47 // pred_check
        %p933 = pneg %p211
      $region50: #{_lambda_.1} parent=47 // pred_check_branch
        %935 = sbr.rel (%p933) target = $region52
      $region51: #{_lambda_.1} parent=47 // pred_region
        _
      $region52: #{_lambda_.1} parent=47 // pred_fallthru
        _
    $region48: #{_lambda_.1} parent=5 // pred_fallthru
      _
    %p936 = scmp.le.s32.totalorder 2, %s13
    // Predicated region
    $region53: #{_lambda_.1} parent=5 // pred_check
      %p937 = pneg %p936
    $region54: #{_lambda_.1} parent=5 // pred_check_branch
      %939 = sbr.rel (%p937) target = $region56
    $region55: #{_lambda_.1} parent=5 // pred_region
      %s940 = ssub.s32 %s13, 2
      // Predicated region
      $region57: #{_lambda_.1} parent=55 // pred_check
        %p941 = pneg %p217
      $region58: #{_lambda_.1} parent=55 // pred_check_branch
        %943 = sbr.rel (%p941) target = $region60
      $region59: #{_lambda_.1} parent=55 // pred_region
        %p944 = scmp.lt.s32.totalorder %s24, 1
        %s945 = scalar_select %p944, %s24, 1
        %p946 = scmp.lt.s32.totalorder %s25, 0
        %s947 = scalar_select %p946, %s25, 0
        %s948 = smul.addr %s945, 4
        %s949 = sadd.s32 %s947, %s948
        %s950 = smul.addr %s949, 8
        %s951 = scalar_lea.vmem %s7, %s950
      $region60: #{_lambda_.1} parent=55 // pred_fallthru
        _
    $region56: #{_lambda_.1} parent=5 // pred_fallthru
      _
  $region6: #{_lambda_.1} parent=0 // loop_footer
    %s17 = sadd.s32 1, %s13
  $region7: #{_lambda_.1} parent=0 // loop_footer_branch
    %12 = sbr.rel target = $region3
  $region8: #{_lambda_.1} parent=0 // loop_exit
    _

</llo_original>
